<compile_context>
chip_gen: v5e
topology: v5e:2x2
jax: 0.10.0
libtpu: 0.0.40
codegen_flags: <defaults>
</compile_context>

<pallas_src>
import functools
import math

import jax
import jax.numpy as jnp
from jax.experimental import pallas as pl
from jax.experimental.pallas import tpu as pltpu

PAD_IDX = 1
LN_EPS = 1e-5                   # torch.nn.LayerNorm default
NEG_BIG = -1e9                  # NaN-safe stand-in for -inf in key-padding bias
VMEM_LIMIT = 48 * 1024 * 1024   # headroom below v7x's 64 MiB physical VMEM


# ----------------------------- in-kernel helpers -----------------------------

def _layer_norm(x, g, b):
    mean = jnp.mean(x, axis=-1, keepdims=True)
    var = jnp.mean(jnp.square(x - mean), axis=-1, keepdims=True)
    return (x - mean) * jax.lax.rsqrt(var + LN_EPS) * g + b


def _gelu_exact(x):
    # torch.nn.functional.gelu default (erf-based, non-approximate), fp32
    return 0.5 * x * (1.0 + jax.lax.erf(x * (1.0 / math.sqrt(2.0))))


def _softmax_lastdim(s):
    m = jnp.max(s, axis=-1, keepdims=True)
    e = jnp.exp(s - m)
    # EUP reciprocal instead of a full-precision VPU divide.
    return e * pl.reciprocal(jnp.sum(e, axis=-1, keepdims=True), approx=True)


# --------------------------- small structural helpers --------------------------

def _row_tile(n):
    """Largest convenient row-tile that divides n (bounds activation VMEM)."""
    for cand in (512, 256, 128, 64, 32, 16, 8):
        if n % cand == 0:
            return cand
    return n


@functools.lru_cache(maxsize=1)
def _weight_pipeline_mode():
    """Single-buffer grid-invariant (replicated weight) blocks when supported:
    halves their VMEM residency (matters most on v7x's 64 MiB VMEM).  Probed
    once eagerly; falls back to default double-buffering if unsupported."""
    try:
        mode = pl.Buffered(1)

        def probe(x_ref, w_ref, o_ref):
            o_ref[...] = x_ref[...] + w_ref[...]

        out = pl.pallas_call(
            probe,
            out_shape=jax.ShapeDtypeStruct((16, 128), jnp.float32),
            grid=(2,),
            in_specs=[
                pl.BlockSpec((8, 128), lambda i: (i, 0)),
                pl.BlockSpec((8, 128), lambda i: (0, 0), pipeline_mode=mode),
            ],
            out_specs=pl.BlockSpec((8, 128), lambda i: (i, 0)),
        )(jnp.zeros((16, 128), jnp.float32), jnp.ones((8, 128), jnp.float32))
        jax.block_until_ready(out)
        return mode
    except Exception:
        return None


def _rep(shape, pipeline_mode=None):
    """BlockSpec for a weight replicated across the grid (constant block index)."""
    nd = len(shape)
    index_map = lambda *_: (0,) * nd
    if pipeline_mode is None:
        return pl.BlockSpec(shape, index_map)
    return pl.BlockSpec(shape, index_map, pipeline_mode=pipeline_mode)


# ------------------------------ Pallas kernels -------------------------------

def embed_ln_kernel(x_ref, g_ref, b_ref, o_ref):
    """LayerNorm(token_emb + pos_emb) for a tile of tokens (pad-zero is done
    in the wrapper from the lane-dense (B, T) mask)."""
    o_ref[...] = _layer_norm(x_ref[...], g_ref[...], b_ref[...])


def qkv_proj_kernel(x_ref, w_in_ref, b_in_ref, o_ref):
    """(tm, D) fp32 -> (tm, 3D) bf16.  The 1/sqrt(head_dim) scaling is folded
    into the Q columns of w_in / b_in at parameter-setup time."""
    qkv = jnp.dot(x_ref[...].astype(jnp.bfloat16), w_in_ref[...],
                  preferred_element_type=jnp.float32) + b_in_ref[...]
    o_ref[...] = qkv.astype(jnp.bfloat16)


def attn_core_kernel(q_ref, k_ref, v_ref, bias_ref, o_ref):
    """One (batch, head): scores = q @ k^T (bf16 MXU, fp32 acc) + additive
    key-padding bias, fp32 softmax, then P @ V (bf16 MXU, fp32 acc)."""
    q = q_ref[...]                                   # (T, hd) bf16
    k = k_ref[...]
    v = v_ref[...]
    s = jax.lax.dot_general(q, k, (((1,), (1,)), ((), ())),
                            preferred_element_type=jnp.float32)     # (T, T)
    s = s + bias_ref[...]                            # (1, T) broadcast over queries
    p = _softmax_lastdim(s)
    o = jnp.dot(p.astype(jnp.bfloat16), v, preferred_element_type=jnp.float32)
    o_ref[...] = o.astype(o_ref.dtype)
    # TODO(synk): for long sequences, make this a flash-style online-softmax
    # kernel tiled over K (and query rows) to bound the (T, T) score tile.


def out_ffn_kernel(x_ref, attn_ref,
                   w_out_ref, b_out_ref, g1_ref, be1_ref,
                   w1_ref, b1_ref, w2_ref, b2_ref, g2_ref, be2_ref,
                   o_ref):
    """Row tile: attention out-projection + residual + LN1, then the
    ResidualMLP (Linear -> GeLU -> Linear, residual) + final LN2."""
    a = jnp.dot(attn_ref[...], w_out_ref[...],
                preferred_element_type=jnp.float32) + b_out_ref[...]
    y = _layer_norm(x_ref[...] + a, g1_ref[...], be1_ref[...])
    h = jnp.dot(y.astype(jnp.bfloat16), w1_ref[...],
                preferred_element_type=jnp.float32) + b1_ref[...]
    h = _gelu_exact(h)
    z = jnp.dot(h.astype(jnp.bfloat16), w2_ref[...],
                preferred_element_type=jnp.float32) + b2_ref[...]
    o_ref[...] = _layer_norm(y + z, g2_ref[...], be2_ref[...])


# ------------------------------- JAX wrappers ---------------------------------

def embed_layer_norm(x2, g, b, wmode):
    n, d = x2.shape
    tm = _row_tile(n)
    row = pl.BlockSpec((tm, d), lambda i: (i, 0))
    return pl.pallas_call(
        embed_ln_kernel,
        out_shape=jax.ShapeDtypeStruct((n, d), jnp.float32),
        grid=(n // tm,),
        in_specs=[row, _rep((1, d), wmode), _rep((1, d), wmode)],
        out_specs=row,
        compiler_params=pltpu.CompilerParams(
            dimension_semantics=("parallel",),
            vmem_limit_bytes=VMEM_LIMIT),
    )(x2, g, b)


def qkv_projection(x2, lp, wmode):
    n, d = x2.shape
    d3 = lp["w_in"].shape[1]
    tm = _row_tile(n)
    return pl.pallas_call(
        qkv_proj_kernel,
        out_shape=jax.ShapeDtypeStruct((n, d3), jnp.bfloat16),
        grid=(n // tm,),
        in_specs=[pl.BlockSpec((tm, d), lambda i: (i, 0)),
                  _rep((d, d3), wmode), _rep((1, d3), wmode)],
        out_specs=pl.BlockSpec((tm, d3), lambda i: (i, 0)),
        compiler_params=pltpu.CompilerParams(
            dimension_semantics=("parallel",),
            vmem_limit_bytes=VMEM_LIMIT),
    )(x2, lp["w_in"], lp["b_in"])


def attention_core(q, k, v, bias):
    batch, num_heads, t, hd = q.shape
    blk = pl.BlockSpec((None, None, t, hd), lambda b, h: (b, h, 0, 0))
    return pl.pallas_call(
        attn_core_kernel,
        out_shape=jax.ShapeDtypeStruct((batch, num_heads, t, hd), jnp.bfloat16),
        grid=(batch, num_heads),                       # both axes parallel (megacore)
        in_specs=[blk, blk, blk,
                  pl.BlockSpec((None, 1, t), lambda b, h: (b, 0, 0))],
        out_specs=blk,
        compiler_params=pltpu.CompilerParams(
            dimension_semantics=("parallel", "parallel"),
            vmem_limit_bytes=VMEM_LIMIT),
    )(q, k, v, bias)


def out_proj_ffn(x2, attn2, lp, wmode):
    n, d = x2.shape
    f = lp["w1"].shape[1]
    tm = _row_tile(n)
    row = pl.BlockSpec((tm, d), lambda i: (i, 0))
    return pl.pallas_call(
        out_ffn_kernel,
        out_shape=jax.ShapeDtypeStruct((n, d), jnp.float32),
        grid=(n // tm,),
        in_specs=[row, row,
                  _rep((d, d), wmode), _rep((1, d), wmode),
                  _rep((1, d), wmode), _rep((1, d), wmode),
                  _rep((d, f), wmode), _rep((1, f), wmode),
                  _rep((f, d), wmode), _rep((1, d), wmode),
                  _rep((1, d), wmode), _rep((1, d), wmode)],
        out_specs=row,
        compiler_params=pltpu.CompilerParams(
            dimension_semantics=("parallel",),
            vmem_limit_bytes=VMEM_LIMIT),
    )(x2, attn2, lp["w_out"], lp["b_out"], lp["ln1_g"], lp["ln1_b"],
      lp["w1"], lp["b1"], lp["w2"], lp["b2"], lp["ln2_g"], lp["ln2_b"])


def roberta_encoder_forward(tokens, params, num_heads):
    """Matches RobertaEncoder.forward(tokens) in eval mode -> (B, D) sentence rep."""
    b, t = tokens.shape
    d = params["tok_emb"].shape[1]
    hd = d // num_heads
    n = b * t
    # make_positions can reach t + PAD_IDX: guard the positional table size.
    assert params["pos_emb"].shape[0] >= t + PAD_IDX + 1

    nonpad = (tokens != PAD_IDX).astype(jnp.int32)
    # pytext PositionalEmbedding.make_positions: cumsum over non-pad * mask + pad_idx
    positions = jnp.cumsum(nonpad, axis=1) * nonpad + PAD_IDX

    x = params["tok_emb"][tokens] + params["pos_emb"][positions]     # (B, T, D) f32

    keep = nonpad.astype(jnp.float32)                                # (B, T)
    attn_bias = ((1.0 - keep) * NEG_BIG)[:, None, :]                 # (B, 1, T) f32

    wmode = _weight_pipeline_mode()

    # LayerNorm(tok + pos), then zero padding positions (pytext padded_embedded).
    x2 = embed_layer_norm(x.reshape(n, d),
                          params["emb_ln_g"], params["emb_ln_b"], wmode)
    x2 = x2 * keep.reshape(n, 1)

    for lp in params["layers"]:
        qkv = qkv_projection(x2, lp, wmode)                          # (N, 3D) bf16
        # head split (plain XLA glue): (N, 3D) -> q/k/v, each (B, H, T, hd)
        qkv = qkv.reshape(b, t, 3, num_heads, hd).transpose(2, 0, 3, 1, 4)
        attn = attention_core(qkv[0], qkv[1], qkv[2], attn_bias)     # (B, H, T, hd)
        attn2 = attn.transpose(0, 2, 1, 3).reshape(n, d)             # (N, D) bf16
        x2 = out_proj_ffn(x2, attn2, lp, wmode)                      # (N, D) f32

    x = x2.reshape(b, t, d)
    # last_layer.transpose(0, 1)[:, 0, :] == x[:, 0, :]; output_dropout = identity.
    return x[:, 0, :]


# ---------------------------- parameter initialization ------------------------

def init_roberta_params(key, vocab_size, embedding_dim, num_heads, num_layers,
                        max_positions=64):
    """Deterministic synthetic init mirroring init_params():
       Linear/Embedding weights ~ N(0, 0.02), biases zero, padding rows zero,
       LayerNorm gamma=1 beta=0.  Linear weights stored pre-transposed (in, out)
       and cast to bf16 for the MXU; 1/sqrt(head_dim) folded into w_in/b_in Q."""
    d = embedding_dim
    f = 4 * d
    hd = d // num_heads
    scaling = 1.0 / math.sqrt(hd)
    keys = iter(jax.random.split(key, 2 + 4 * num_layers))

    def nrm(shape):
        return 0.02 * jax.random.normal(next(keys), shape, jnp.float32)

    params = {
        "tok_emb": nrm((vocab_size, d)).at[PAD_IDX].set(0.0),
        "pos_emb": nrm((max_positions, d)).at[PAD_IDX].set(0.0),
        "emb_ln_g": jnp.ones((1, d), jnp.float32),
        "emb_ln_b": jnp.zeros((1, d), jnp.float32),
        "layers": [],
    }
    for _ in range(num_layers):
        w_in = nrm((d, 3 * d)).at[:, :d].multiply(scaling)   # fold q scaling
        b_in = jnp.zeros((1, 3 * d), jnp.float32)            # (q bias scaling is a no-op)
        params["layers"].append({
            "w_in": w_in.astype(jnp.bfloat16), "b_in": b_in,
            "w_out": nrm((d, d)).astype(jnp.bfloat16),
            "b_out": jnp.zeros((1, d), jnp.float32),
            "ln1_g": jnp.ones((1, d), jnp.float32),
            "ln1_b": jnp.zeros((1, d), jnp.float32),
            "w1": nrm((d, f)).astype(jnp.bfloat16),
            "b1": jnp.zeros((1, f), jnp.float32),
            "w2": nrm((f, d)).astype(jnp.bfloat16),
            "b2": jnp.zeros((1, d), jnp.float32),
            "ln2_g": jnp.ones((1, d), jnp.float32),
            "ln2_b": jnp.zeros((1, d), jnp.float32),
        })
    return params


# ------------------------------------ main ------------------------------------

if __name__ == "__main__":
    vocab_size = 100
    embedding_dim = 128          # multiple of 128 -> lane-dense blocks, unmasked stores
    num_attention_heads = 4      # head_dim = 32
    num_encoder_layers = 2
    B, T = 2, 16

    key = jax.random.PRNGKey(0)
    pkey, tkey = jax.random.split(key)

    params = init_roberta_params(pkey, vocab_size, embedding_dim,
                                 num_attention_heads, num_encoder_layers,
                                 max_positions=64)

    tokens = jax.random.randint(tkey, (B, T), 2, vocab_size, dtype=jnp.int32)
    tokens = tokens.at[:, 0].set(0)            # BOS-like token
    tokens = tokens.at[:, -3:].set(PAD_IDX)    # some padding at the tail

    out = roberta_encoder_forward(tokens, params, num_attention_heads)
    out = jax.block_until_ready(out)

    assert out.shape == (B, embedding_dim)
    assert bool(jnp.all(jnp.isfinite(out)))
    print("KERNEL_OK")
</pallas_src>

<mosaic_0001>
module attributes {stable_mosaic.version = 11 : i64} {
  func.func @probe(%arg0: i32, %arg1: memref<8x128xf32, #tpu.memory_space<vmem>>, %arg2: memref<8x128xf32, #tpu.memory_space<vmem>>, %arg3: memref<8x128xf32, #tpu.memory_space<vmem>>) attributes {dimension_semantics = [#tpu.dimension_semantics<arbitrary>], iteration_bounds = array<i64: 2>, scalar_prefetch = 0 : i64, scratch_operands = 0 : i64, tpu.core_type = #tpu.core_type<tc>, window_params = [{transform_indices = @transform_0, window_bounds = array<i64: 8, 128>}, {pipeline_mode = #tpu.pipeline_mode<synchronous>, transform_indices = @transform_1, window_bounds = array<i64: 8, 128>}, {transform_indices = @transform_2, window_bounds = array<i64: 8, 128>}]} {
    %c0 = arith.constant 0 : index
    %c0_0 = arith.constant 0 : index
    %0 = vector.load %arg1[%c0, %c0_0] : memref<8x128xf32, #tpu.memory_space<vmem>>, vector<8x128xf32>
    %c0_1 = arith.constant 0 : index
    %c0_2 = arith.constant 0 : index
    %1 = vector.load %arg2[%c0_1, %c0_2] : memref<8x128xf32, #tpu.memory_space<vmem>>, vector<8x128xf32>
    %2 = arith.addf %0, %1 : vector<8x128xf32>
    %c0_3 = arith.constant 0 : index
    %c0_4 = arith.constant 0 : index
    %3 = vector.load %arg3[%c0_3, %c0_4] : memref<8x128xf32, #tpu.memory_space<vmem>>, vector<8x128xf32>
    tpu.vector_store %arg3[%c0_3, %c0_4], %2 {strides = array<i32>} : memref<8x128xf32, #tpu.memory_space<vmem>>, vector<8x128xf32>,
    return
  }
  func.func @transform_0(%arg0: i32) -> (i32, i32) {
    %c0_i32 = arith.constant 0 : i32
    %c0_i32_0 = arith.constant 0 : i32
    return %arg0, %c0_i32 : i32, i32
  }
  func.func @transform_1(%arg0: i32) -> (i32, i32) {
    %c0_i32 = arith.constant 0 : i32
    %c0_i32_0 = arith.constant 0 : i32
    %c0_i32_1 = arith.constant 0 : i32
    return %c0_i32, %c0_i32_0 : i32, i32
  }
  func.func @transform_2(%arg0: i32) -> (i32, i32) {
    %c0_i32 = arith.constant 0 : i32
    %c0_i32_0 = arith.constant 0 : i32
    return %arg0, %c0_i32 : i32, i32
  }
}

module attributes {stable_mosaic.version = 11 : i64} {
  func.func @embed_ln_kernel(%arg0: i32, %arg1: memref<32x128xf32, #tpu.memory_space<vmem>>, %arg2: memref<1x128xf32, #tpu.memory_space<vmem>>, %arg3: memref<1x128xf32, #tpu.memory_space<vmem>>, %arg4: memref<32x128xf32, #tpu.memory_space<vmem>>) attributes {dimension_semantics = [#tpu.dimension_semantics<parallel>], iteration_bounds = array<i64: 1>, scalar_prefetch = 0 : i64, scratch_operands = 0 : i64, tpu.core_type = #tpu.core_type<tc>, window_params = [{transform_indices = @transform_0, window_bounds = array<i64: 32, 128>}, {pipeline_mode = #tpu.pipeline_mode<synchronous>, transform_indices = @transform_1, window_bounds = array<i64: 1, 128>}, {pipeline_mode = #tpu.pipeline_mode<synchronous>, transform_indices = @transform_2, window_bounds = array<i64: 1, 128>}, {transform_indices = @transform_3, window_bounds = array<i64: 32, 128>}]} {
    %c0 = arith.constant 0 : index
    %c0_0 = arith.constant 0 : index
    %0 = vector.load %arg1[%c0, %c0_0] : memref<32x128xf32, #tpu.memory_space<vmem>>, vector<32x128xf32>
    %c0_1 = arith.constant 0 : index
    %c0_2 = arith.constant 0 : index
    %1 = vector.load %arg2[%c0_1, %c0_2] : memref<1x128xf32, #tpu.memory_space<vmem>>, vector<1x128xf32>
    %c0_3 = arith.constant 0 : index
    %c0_4 = arith.constant 0 : index
    %2 = vector.load %arg3[%c0_3, %c0_4] : memref<1x128xf32, #tpu.memory_space<vmem>>, vector<1x128xf32>
    %cst = arith.constant dense<0.000000e+00> : vector<32xf32>
    %3 = vector.multi_reduction <add>, %0, %cst [1] : vector<32x128xf32> to vector<32xf32>
    %4 = vector.shape_cast %3 : vector<32xf32> to vector<32x1xf32>
    %cst_5 = arith.constant 1.280000e+02 : f32
    %5 = vector.broadcast %cst_5 : f32 to vector<32x1xf32>
    %6 = arith.divf %4, %5 : vector<32x1xf32>
    %7 = vector.broadcast %6 : vector<32x1xf32> to vector<32x128xf32>
    %8 = arith.subf %0, %7 : vector<32x128xf32>
    %9 = arith.mulf %8, %8 : vector<32x128xf32>
    %cst_6 = arith.constant dense<0.000000e+00> : vector<32xf32>
    %10 = vector.multi_reduction <add>, %9, %cst_6 [1] : vector<32x128xf32> to vector<32xf32>
    %11 = vector.shape_cast %10 : vector<32xf32> to vector<32x1xf32>
    %cst_7 = arith.constant 1.280000e+02 : f32
    %12 = vector.broadcast %cst_7 : f32 to vector<32x1xf32>
    %13 = arith.divf %11, %12 : vector<32x1xf32>
    %14 = vector.broadcast %6 : vector<32x1xf32> to vector<32x128xf32>
    %15 = arith.subf %0, %14 : vector<32x128xf32>
    %cst_8 = arith.constant 9.99999974E-6 : f32
    %16 = vector.broadcast %cst_8 : f32 to vector<32x1xf32>
    %17 = arith.addf %13, %16 : vector<32x1xf32>
    %18 = math.rsqrt %17 : vector<32x1xf32>
    %19 = vector.broadcast %18 : vector<32x1xf32> to vector<32x128xf32>
    %20 = arith.mulf %15, %19 : vector<32x128xf32>
    %21 = vector.broadcast %1 : vector<1x128xf32> to vector<32x128xf32>
    %22 = arith.mulf %20, %21 : vector<32x128xf32>
    %23 = vector.broadcast %2 : vector<1x128xf32> to vector<32x128xf32>
    %24 = arith.addf %22, %23 : vector<32x128xf32>
    %c0_9 = arith.constant 0 : index
    %c0_10 = arith.constant 0 : index
    %25 = vector.load %arg4[%c0_9, %c0_10] : memref<32x128xf32, #tpu.memory_space<vmem>>, vector<32x128xf32>
    tpu.vector_store %arg4[%c0_9, %c0_10], %24 {strides = array<i32>} : memref<32x128xf32, #tpu.memory_space<vmem>>, vector<32x128xf32>,
    return
  }
  func.func @transform_0(%arg0: i32) -> (i32, i32) {
    %c0_i32 = arith.constant 0 : i32
    %c0_i32_0 = arith.constant 0 : i32
    return %arg0, %c0_i32 : i32, i32
  }
  func.func @transform_1(%arg0: i32) -> (i32, i32) {
    %c0_i32 = arith.constant 0 : i32
    %c0_i32_0 = arith.constant 0 : i32
    %c0_i32_1 = arith.constant 0 : i32
    return %c0_i32, %c0_i32_0 : i32, i32
  }
  func.func @transform_2(%arg0: i32) -> (i32, i32) {
    %c0_i32 = arith.constant 0 : i32
    %c0_i32_0 = arith.constant 0 : i32
    %c0_i32_1 = arith.constant 0 : i32
    return %c0_i32, %c0_i32_0 : i32, i32
  }
  func.func @transform_3(%arg0: i32) -> (i32, i32) {
    %c0_i32 = arith.constant 0 : i32
    %c0_i32_0 = arith.constant 0 : i32
    return %arg0, %c0_i32 : i32, i32
  }
}

</mosaic_0001>

<llo_original>
// kernel: tpu_custom_call.1
$region0: #{tpu_custom_call.1}
  #allocation0 [shape = 'u32[]', space=smem, size = 0x4, offset = 0x4, fixed_abs, tag = 'smem constant byte address 0x4 - core index']
  #allocation1 [shape = 'u32[72,128]{1,0:T(1,128)}', space=vmem, size = 0x9000, scoped, tag = 'internal scratch']
  %s0 = inlined_call_operand.hbm [shape: f32[16,128], index: 0, kind: input, shape index: {}]
  %s1 = inlined_call_operand.hbm [shape: f32[8,128], index: 1, kind: input, shape index: {}]
  %s2 = inlined_call_operand.hbm [shape: f32[16,128], index: 2, kind: output, shape index: {}]
  %s3 = sld [smem:[#allocation0]]
  $region49: #{tpu_custom_call.1} parent=0
    _
  %s5 = ssub.s32 1, %s3
  %s6 = scalar_select 0, %s5, %s3
  $region1: #{tpu_custom_call.1} parent=0
    #allocation2 [shape = 'u8[8192]{0}', space=vmem, size = 0x2000, scoped, tag = 'input window, operand 0']
    #allocation3 [shape = 's32[2]{0}', space=sflag, size = 0x8, scoped, tag = 'scoped memory for tpu_custom_call.1']
    #allocation4 [shape = 's32[2]{0}', space=sflag, size = 0x8, scoped, tag = 'scoped memory for tpu_custom_call.1']
    #allocation5 [shape = 'u8[4096]{0}', space=vmem, size = 0x1000, scoped, tag = 'input window, operand 1, single buffered']
    #allocation6 [shape = 's32[1]{0}', space=sflag, size = 0x4, scoped, tag = 'scoped memory for tpu_custom_call.1']
    #allocation7 [shape = 'u8[8192]{0}', space=vmem, size = 0x2000, scoped, tag = 'output window, operand 0']
    %7 = vsyncpa [#allocation3], 0
    %s8 = scalar_lea.sflag [#allocation3], 1
    %9 = vsyncpa %s8, 0
    %10 = vsyncpa [#allocation6], 0
    %11 = vsyncpa [#allocation4], 0
    %s12 = scalar_lea.sflag [#allocation4], 1
    %13 = vsyncpa %s12, 0
    loop: start=0, step=1, limit=4
    $region2: #{tpu_custom_call.1} parent=1 // loop_pre_header
      _
    $region3: #{tpu_custom_call.1} parent=1 // loop_header
      %s15 = sphi 0, %s19
      %p16 = scmp.ge.s32.totalorder %s15, 4
      %s25 = sphi 0, %s27
      %s28 = sphi 0, %s25
      %s29 = sphi 0, %s28
      %s45 = sphi 0, %s29
      %s49 = sphi 0, %s49
      %s51 = sphi 0, %s49
      %s52 = sphi 0, %s51
      %s66 = sphi 0, %s52
      %s72 = sphi 0, %s74
      %s75 = sphi 0, %s72
      %s76 = sphi 0, %s75
      %s92 = sphi 0, %s76
    $region4: #{tpu_custom_call.1} parent=1 // loop_header_branch
      %18 = sbr.rel (%p16) target = $region8
    $region5: #{tpu_custom_call.1} parent=1 // loop_body
      %s20 = ssub.s32 %s15, 1
      %s21 = ssub.s32 %s15, 2
      %s22 = sadd.s32 %s15, 1
      %s23 = ssub.s32 %s15, %s22
      %p24 = scmp.eq.s32.totalorder %s23, 0
      %s26 = sadd.s32 %s25, 1
      %s27 = scalar_select %p24, %s25, %s26
      %p30 = pneg %p24
      %p31 = scmp.eq.s32.totalorder %s15, 1
      %p32 = por %p30, %p31
      %p33 = scmp.ne.s32.totalorder %s25, %s28
      %p34 = scmp.eq.s32.totalorder %s15, 0
      %p35 = por %p33, %p34
      %p36 = scmp.ne.s32.totalorder %s25, %s28
      %p37 = scmp.eq.s32.totalorder %s20, 1
      %p38 = por %p36, %p37
      %p39 = scmp.ne.s32.totalorder %s28, %s29
      %p40 = scmp.eq.s32.totalorder %s20, 0
      %p41 = por %p39, %p40
      %p42 = scmp.ne.s32.totalorder %s28, %s29
      %p43 = scmp.eq.s32.totalorder %s21, 1
      %p44 = por %p42, %p43
      %p46 = scmp.ne.s32.totalorder %s29, %s45
      %p47 = scmp.eq.s32.totalorder %s21, 0
      %p48 = por %p46, %p47
      %s50 = sadd.s32 %s49, 1
      %p53 = scmp.eq.s32.totalorder %s15, 1
      %p54 = scmp.ne.s32.totalorder %s49, %s51
      %p55 = scmp.eq.s32.totalorder %s15, 0
      %p56 = por %p54, %p55
      %p57 = scmp.ne.s32.totalorder %s49, %s51
      %p58 = scmp.eq.s32.totalorder %s20, 1
      %p59 = por %p57, %p58
      %p60 = scmp.ne.s32.totalorder %s51, %s52
      %p61 = scmp.eq.s32.totalorder %s20, 0
      %p62 = por %p60, %p61
      %p63 = scmp.ne.s32.totalorder %s51, %s52
      %p64 = scmp.eq.s32.totalorder %s21, 1
      %p65 = por %p63, %p64
      %p67 = scmp.ne.s32.totalorder %s52, %s66
      %p68 = scmp.eq.s32.totalorder %s21, 0
      %p69 = por %p67, %p68
      %s70 = ssub.s32 %s15, %s22
      %p71 = scmp.eq.s32.totalorder %s70, 0
      %s73 = sadd.s32 %s72, 1
      %s74 = scalar_select %p71, %s72, %s73
      %p77 = pneg %p71
      %p78 = scmp.eq.s32.totalorder %s15, 1
      %p79 = por %p77, %p78
      %p80 = scmp.ne.s32.totalorder %s72, %s75
      %p81 = scmp.eq.s32.totalorder %s15, 0
      %p82 = por %p80, %p81
      %p83 = scmp.ne.s32.totalorder %s72, %s75
      %p84 = scmp.eq.s32.totalorder %s20, 1
      %p85 = por %p83, %p84
      %p86 = scmp.ne.s32.totalorder %s75, %s76
      %p87 = scmp.eq.s32.totalorder %s20, 0
      %p88 = por %p86, %p87
      %p89 = scmp.ne.s32.totalorder %s75, %s76
      %p90 = scmp.eq.s32.totalorder %s21, 1
      %p91 = por %p89, %p90
      %p93 = scmp.ne.s32.totalorder %s76, %s92
      %p94 = scmp.eq.s32.totalorder %s21, 0
      %p95 = por %p93, %p94
      %p96 = scmp.le.s32.totalorder 1, %s15
      %p97 = scmp.lt.s32.totalorder %s15, 3
      %p98 = pnand %p96, %p97
      %p99 = pneg %p98
      // Predicated region
      $region9: #{tpu_custom_call.1} parent=5 // pred_check
        _
      $region10: #{tpu_custom_call.1} parent=5 // pred_check_branch
        %101 = sbr.rel (%p98) target = $region12
      $region11: #{tpu_custom_call.1} parent=5 // pred_region
        %s102 = ssub.s32 %s15, 1
        // Predicated region
        $region13: #{tpu_custom_call.1} parent=11 // pred_check
          %p103 = pneg %p62
        $region14: #{tpu_custom_call.1} parent=11 // pred_check_branch
          %105 = sbr.rel (%p103) target = $region16
        $region15: #{tpu_custom_call.1} parent=11 // pred_region
          %107 = vsyncadd [#allocation6], 0
          %s109 = sshll.u32 %s1, 4
          %s110 = int_to_ptr.hbm [resolvable:$true] %s109
          %s111 = sshll.u32 [#allocation5], 4
          %s112 = int_to_ptr.vmem [resolvable:$true] %s111
          %114 = dma.hbm_to_vmem [thread:$0]  %s110, 128, %s112, [#allocation6]
        $region16: #{tpu_custom_call.1} parent=11 // pred_fallthru
          _
      $region12: #{tpu_custom_call.1} parent=5 // pred_fallthru
        _
      %p115 = scmp.lt.s32.totalorder %s15, 2
      // Predicated region
      $region17: #{tpu_custom_call.1} parent=5 // pred_check
        %p116 = pneg %p115
      $region18: #{tpu_custom_call.1} parent=5 // pred_check_branch
        %118 = sbr.rel (%p116) target = $region20
      $region19: #{tpu_custom_call.1} parent=5 // pred_region
        // Predicated region
        $region21: #{tpu_custom_call.1} parent=19 // pred_check
          %p119 = pneg %p35
        $region22: #{tpu_custom_call.1} parent=19 // pred_check_branch
          %121 = sbr.rel (%p119) target = $region24
        $region23: #{tpu_custom_call.1} parent=19 // pred_region
          %s122 = sand.u32 %s25, 1
          %s123 = scalar_lea.sflag [#allocation3], %s122
          %s124 = sand.u32 %s25, 1
          %s125 = smul.addr %s124, 8
          %s126 = scalar_lea.vmem [#allocation2], %s125
          %128 = vsyncadd %s123, 0
          %s129 = smul.addr %s15, 8
          %s130 = scalar_lea.hbm %s0, %s129
          %s132 = sshll.u32 %s130, 4
          %s133 = int_to_ptr.hbm [resolvable:$true] %s132
          %s134 = sshll.u32 %s126, 4
          %s135 = int_to_ptr.vmem [resolvable:$true] %s134
          %137 = dma.hbm_to_vmem [thread:$0]  %s133, 128, %s135, %s123
        $region24: #{tpu_custom_call.1} parent=19 // pred_fallthru
          _
      $region20: #{tpu_custom_call.1} parent=5 // pred_fallthru
        _
      %p138 = scmp.le.s32.totalorder 1, %s15
      %p139 = scmp.lt.s32.totalorder %s15, 3
      %p140 = pnand %p138, %p139
      %p141 = pneg %p140
      // Predicated region
      $region25: #{tpu_custom_call.1} parent=5 // pred_check
        _
      $region26: #{tpu_custom_call.1} parent=5 // pred_check_branch
        %143 = sbr.rel (%p140) target = $region28
      $region27: #{tpu_custom_call.1} parent=5 // pred_region
        %s144 = ssub.s32 %s15, 1
        %s145 = sand.u32 %s28, 1
        %s146 = scalar_lea.sflag [#allocation3], %s145
        %s147 = sand.u32 %s28, 1
        %s148 = smul.addr %s147, 8
        %s149 = scalar_lea.vmem [#allocation2], %s148
        // Predicated region
        $region29: #{tpu_custom_call.1} parent=27 // pred_check
          %p150 = pneg %p41
        $region30: #{tpu_custom_call.1} parent=27 // pred_check_branch
          %152 = sbr.rel (%p150) target = $region32
        $region31: #{tpu_custom_call.1} parent=27 // pred_region
          %154 = dma.done %s146, 128
        $region32: #{tpu_custom_call.1} parent=27 // pred_fallthru
          _
        // Predicated region
        $region33: #{tpu_custom_call.1} parent=27 // pred_check
          %p155 = pneg %p62
        $region34: #{tpu_custom_call.1} parent=27 // pred_check_branch
          %157 = sbr.rel (%p155) target = $region36
        $region35: #{tpu_custom_call.1} parent=27 // pred_region
          %159 = dma.done [#allocation6], 128
        $region36: #{tpu_custom_call.1} parent=27 // pred_fallthru
          _
        %s160 = sand.u32 %s28, 1
        %s161 = scalar_lea.sflag [#allocation3], %s160
        %s162 = sand.u32 %s28, 1
        %s163 = smul.addr %s162, 8
        %s164 = scalar_lea.vmem [#allocation2], %s163
        %p165 = pneg %p41
        %p166 = pneg %p38
        %p167 = pneg %p62
        %p168 = pneg %p59
        %p169 = pneg %p88
        %p170 = pneg %p85
        %s171 = sand.u32 %s75, 1
        %s172 = scalar_lea.sflag [#allocation4], %s171
        %s173 = sand.u32 %s75, 1
        %s174 = smul.addr %s173, 8
        %s175 = scalar_lea.vmem [#allocation7], %s174
        %v176 = vld [vmem:[%s149] sm:$0xff]
        %v177 = vld [vmem:[#allocation5] sm:$0xff]
        %v178 = vadd.f32 %v176, %v177
        %179 = vst [vmem:[%s175] sm:$0xff] %v178
        %s180 = sand.u32 %s75, 1
        %s181 = scalar_lea.sflag [#allocation4], %s180
        %s182 = sand.u32 %s75, 1
        %s183 = smul.addr %s182, 8
        %s184 = scalar_lea.vmem [#allocation7], %s183
        // Predicated region
        $region37: #{tpu_custom_call.1} parent=27 // pred_check
          %p185 = pneg %p85
        $region38: #{tpu_custom_call.1} parent=27 // pred_check_branch
          %187 = sbr.rel (%p185) target = $region40
        $region39: #{tpu_custom_call.1} parent=27 // pred_region
          %189 = vsyncadd %s181, 0
          %s190 = smul.addr %s20, 8
          %s191 = scalar_lea.hbm %s2, %s190
          %s193 = sshll.u32 %s184, 4
          %s194 = int_to_ptr.vmem [resolvable:$true] %s193
          %s195 = sshll.u32 %s191, 4
          %s196 = int_to_ptr.hbm [resolvable:$true] %s195
          %198 = dma.vmem_to_hbm [thread:$0]  %s194, 128, %s196, %s181
        $region40: #{tpu_custom_call.1} parent=27 // pred_fallthru
          _
      $region28: #{tpu_custom_call.1} parent=5 // pred_fallthru
        _
      %p199 = scmp.le.s32.totalorder 2, %s15
      // Predicated region
      $region41: #{tpu_custom_call.1} parent=5 // pred_check
        %p200 = pneg %p199
      $region42: #{tpu_custom_call.1} parent=5 // pred_check_branch
        %202 = sbr.rel (%p200) target = $region44
      $region43: #{tpu_custom_call.1} parent=5 // pred_region
        %s203 = ssub.s32 %s15, 2
        // Predicated region
        $region45: #{tpu_custom_call.1} parent=43 // pred_check
          %p204 = pneg %p91
        $region46: #{tpu_custom_call.1} parent=43 // pred_check_branch
          %206 = sbr.rel (%p204) target = $region48
        $region47: #{tpu_custom_call.1} parent=43 // pred_region
          %s207 = sand.u32 %s76, 1
          %s208 = scalar_lea.sflag [#allocation4], %s207
          %s209 = sand.u32 %s76, 1
          %s210 = smul.addr %s209, 8
          %s211 = scalar_lea.vmem [#allocation7], %s210
          %213 = dma.done %s208, 128
        $region48: #{tpu_custom_call.1} parent=43 // pred_fallthru
          _
      $region44: #{tpu_custom_call.1} parent=5 // pred_fallthru
        _
    $region6: #{tpu_custom_call.1} parent=1 // loop_footer
      %s19 = sadd.s32 1, %s15
    $region7: #{tpu_custom_call.1} parent=1 // loop_footer_branch
      %14 = sbr.rel target = $region3
    $region8: #{tpu_custom_call.1} parent=1 // loop_exit
      _
    %214 = vsyncpa [#allocation3], 1
    %s215 = scalar_lea.sflag [#allocation3], 1
    %216 = vsyncpa %s215, 1
    %217 = vsyncpa [#allocation6], 1
    %218 = vsyncpa [#allocation4], 1
    %s219 = scalar_lea.sflag [#allocation4], 1
    %220 = vsyncpa %s219, 1

// kernel: tpu_custom_call.1
$region0: #{tpu_custom_call.1}
  #allocation0 [shape = 'u32[]', space=smem, size = 0x4, offset = 0x4, fixed_abs, tag = 'smem constant byte address 0x4 - core index']
  #allocation1 [shape = 'u32[72,128]{1,0:T(1,128)}', space=vmem, size = 0x9000, scoped, tag = 'internal scratch']
  %s0 = inlined_call_operand.hbm [shape: f32[32,128], index: 0, kind: input, shape index: {}]
  %s1 = inlined_call_operand.hbm [shape: f32[1,128], index: 1, kind: input, shape index: {}]
  %s2 = inlined_call_operand.vmem [shape: f32[1,128], index: 2, kind: input, shape index: {}]
  %s3 = inlined_call_operand.hbm [shape: f32[32,128], index: 3, kind: output, shape index: {}]
  %s4 = sld [smem:[#allocation0]]
  $region30: #{tpu_custom_call.1} parent=0
    _
  %s6 = ssub.s32 1, %s4
  %s7 = scalar_select 0, %s6, %s4
  $region1: #{tpu_custom_call.1} parent=0
    #allocation2 [shape = 'u8[16384]{0}', space=vmem, size = 0x4000, scoped, tag = 'input window, operand 0, single buffered']
    #allocation3 [shape = 's32[1]{0}', space=sflag, size = 0x4, scoped, tag = 'scoped memory for tpu_custom_call.1']
    #allocation4 [shape = 's32[1]{0}', space=sflag, size = 0x4, scoped, tag = 'scoped memory for tpu_custom_call.1']
    #allocation5 [shape = 'u8[512]{0}', space=vmem, size = 0x400, scoped, tag = 'input window, operand 1, single buffered']
    #allocation6 [shape = 's32[1]{0}', space=sflag, size = 0x4, scoped, tag = 'scoped memory for tpu_custom_call.1']
    #allocation7 [shape = 'u8[16384]{0}', space=vmem, size = 0x4000, scoped, tag = 'output window, operand 0, single buffered']
    %8 = vsyncpa [#allocation3], 0
    %9 = vsyncpa [#allocation6], 0
    %10 = vsyncpa [#allocation4], 0
    // Predicated region
    $region2: #{tpu_custom_call.1} parent=1 // pred_check
      _
    $region3: #{tpu_custom_call.1} parent=1 // pred_check_branch
      %12 = sbr.rel (0) target = $region5
    $region4: #{tpu_custom_call.1} parent=1 // pred_region
      %14 = vsyncadd [#allocation3], 0
      %s15 = sshll.u32 %s0, 4
      %s16 = int_to_ptr.hbm [resolvable:$true] %s15
      %s17 = sshll.u32 [#allocation2], 4
      %s18 = int_to_ptr.vmem [resolvable:$true] %s17
      %23 = dma.hbm_to_vmem [thread:$0]  %s16, 512, %s18, [#allocation3], 128, 128, 8
    $region5: #{tpu_custom_call.1} parent=1 // pred_fallthru
      _
    // Predicated region
    $region6: #{tpu_custom_call.1} parent=1 // pred_check
      _
    $region7: #{tpu_custom_call.1} parent=1 // pred_check_branch
      %25 = sbr.rel (0) target = $region9
    $region8: #{tpu_custom_call.1} parent=1 // pred_region
      %27 = vsyncadd [#allocation6], 0
      %s29 = sshll.u32 %s1, 4
      %s30 = int_to_ptr.hbm [resolvable:$true] %s29
      %s31 = sshll.u32 [#allocation5], 4
      %s32 = int_to_ptr.vmem [resolvable:$true] %s31
      %34 = dma.hbm_to_vmem [thread:$0]  %s30, 16, %s32, [#allocation6]
    $region9: #{tpu_custom_call.1} parent=1 // pred_fallthru
      _
    // Predicated region
    $region10: #{tpu_custom_call.1} parent=1 // pred_check
      _
    $region11: #{tpu_custom_call.1} parent=1 // pred_check_branch
      %36 = sbr.rel (0) target = $region13
    $region12: #{tpu_custom_call.1} parent=1 // pred_region
      _
    $region13: #{tpu_custom_call.1} parent=1 // pred_fallthru
      _
    // Predicated region
    $region14: #{tpu_custom_call.1} parent=1 // pred_check
      _
    $region15: #{tpu_custom_call.1} parent=1 // pred_check_branch
      %38 = sbr.rel (0) target = $region17
    $region16: #{tpu_custom_call.1} parent=1 // pred_region
      %40 = dma.done [#allocation3], 512
    $region17: #{tpu_custom_call.1} parent=1 // pred_fallthru
      _
    // Predicated region
    $region18: #{tpu_custom_call.1} parent=1 // pred_check
      _
    $region19: #{tpu_custom_call.1} parent=1 // pred_check_branch
      %42 = sbr.rel (0) target = $region21
    $region20: #{tpu_custom_call.1} parent=1 // pred_region
      %44 = dma.done [#allocation6], 16
    $region21: #{tpu_custom_call.1} parent=1 // pred_fallthru
      _
    %v45 = vld [vmem:[#allocation2] sm:$0xff]
    %v46 = vld [vmem:[#allocation2 + $0x8] sm:$0xff]
    %v47 = vld [vmem:[#allocation2 + $0x10] sm:$0xff]
    %v48 = vld [vmem:[#allocation2 + $0x18] sm:$0xff]
    %v49 = vld [vmem:[#allocation5] sm:$0x1]
    %v50 = vld [vmem:[%s2] sm:$0x1]
    %51 = vadd.xlane.f32.xlu0 %v45
    %v52 = vpop.xlane.xlu0 %51
    %53 = vadd.xlane.f32.xlu0 %v46
    %v54 = vpop.xlane.xlu0 %53
    %55 = vadd.xlane.f32.xlu0 %v47
    %v56 = vpop.xlane.xlu0 %55
    %57 = vadd.xlane.f32.xlu0 %v48
    %v58 = vpop.xlane.xlu0 %57
    %v59 = vrcp.pop 128.0
    %v60 = vmul.f32 128.0, %v59
    %v61 = vsub.f32 1.0, %v60
    %v62 = vmul.f32 %v59, %v61
    %v63 = vadd.f32 %v59, %v62
    %vm64 = vweird.f32 %v59
    %v65 = vsel %vm64, %v59, %v63
    %v66 = vmul.f32 %v52, %v65
    %v67 = vmul.f32 %v54, %v65
    %v68 = vmul.f32 %v56, %v65
    %v69 = vmul.f32 %v58, %v65
    %v70 = vsub.f32 %v45, %v66
    %v71 = vsub.f32 %v46, %v67
    %v72 = vsub.f32 %v47, %v68
    %v73 = vsub.f32 %v48, %v69
    %v74 = vmul.f32 %v70, %v70
    %v75 = vmul.f32 %v71, %v71
    %v76 = vmul.f32 %v72, %v72
    %v77 = vmul.f32 %v73, %v73
    %78 = vadd.xlane.f32.xlu0 %v74
    %v79 = vpop.xlane.xlu0 %78
    %80 = vadd.xlane.f32.xlu0 %v75
    %v81 = vpop.xlane.xlu0 %80
    %82 = vadd.xlane.f32.xlu0 %v76
    %v83 = vpop.xlane.xlu0 %82
    %84 = vadd.xlane.f32.xlu0 %v77
    %v85 = vpop.xlane.xlu0 %84
    %v86 = vmul.f32 %v79, %v65
    %v87 = vmul.f32 %v81, %v65
    %v88 = vmul.f32 %v83, %v65
    %v89 = vmul.f32 %v85, %v65
    %v90 = vadd.f32 %v86, 1e-05
    %v91 = vadd.f32 %v87, 1e-05
    %v92 = vadd.f32 %v88, 1e-05
    %v93 = vadd.f32 %v89, 1e-05
    %v94 = vrsqrt.pop %v90
    %v95 = vmul.f32 %v94, %v90
    %v96 = vmul.f32 %v95, %v94
    %v97 = vmul.f32 0.5, %v96
    %v98 = vsub.f32 1.5, %v97
    %v99 = vmul.f32 %v94, %v98
    %vm100 = vweird.f32 %v90
    %vm101 = vweird.f32 %v94
    %vm102 = vmor %vm100, %vm101
    %v103 = vsel %vm102, %v94, %v99
    %v104 = vrsqrt.pop %v91
    %v105 = vmul.f32 %v104, %v91
    %v106 = vmul.f32 %v105, %v104
    %v107 = vmul.f32 0.5, %v106
    %v108 = vsub.f32 1.5, %v107
    %v109 = vmul.f32 %v104, %v108
    %vm110 = vweird.f32 %v91
    %vm111 = vweird.f32 %v104
    %vm112 = vmor %vm110, %vm111
    %v113 = vsel %vm112, %v104, %v109
    %v114 = vrsqrt.pop %v92
    %v115 = vmul.f32 %v114, %v92
    %v116 = vmul.f32 %v115, %v114
    %v117 = vmul.f32 0.5, %v116
    %v118 = vsub.f32 1.5, %v117
    %v119 = vmul.f32 %v114, %v118
    %vm120 = vweird.f32 %v92
    %vm121 = vweird.f32 %v114
    %vm122 = vmor %vm120, %vm121
    %v123 = vsel %vm122, %v114, %v119
    %v124 = vrsqrt.pop %v93
    %v125 = vmul.f32 %v124, %v93
    %v126 = vmul.f32 %v125, %v124
    %v127 = vmul.f32 0.5, %v126
    %v128 = vsub.f32 1.5, %v127
    %v129 = vmul.f32 %v124, %v128
    %vm130 = vweird.f32 %v93
    %vm131 = vweird.f32 %v124
    %vm132 = vmor %vm130, %vm131
    %v133 = vsel %vm132, %v124, %v129
    %v134 = vmul.f32 %v70, %v103
    %v135 = vmul.f32 %v71, %v113
    %v136 = vmul.f32 %v72, %v123
    %v137 = vmul.f32 %v73, %v133
    %v139 = vperm.slane %v49, 0
    %v141 = vmul.f32 %v134, %v139
    %v142 = vmul.f32 %v135, %v139
    %v143 = vmul.f32 %v136, %v139
    %v144 = vmul.f32 %v137, %v139
    %v146 = vperm.slane %v50, 0
    %v148 = vadd.f32 %v141, %v146
    %v149 = vadd.f32 %v142, %v146
    %v150 = vadd.f32 %v143, %v146
    %v151 = vadd.f32 %v144, %v146
    %152 = vst [vmem:[#allocation7] sm:$0xff] %v148
    %153 = vst [vmem:[#allocation7 + $0x8] sm:$0xff] %v149
    %154 = vst [vmem:[#allocation7 + $0x10] sm:$0xff] %v150
    %155 = vst [vmem:[#allocation7 + $0x18] sm:$0xff] %v151
    // Predicated region
    $region22: #{tpu_custom_call.1} parent=1 // pred_check
      _
    $region23: #{tpu_custom_call.1} parent=1 // pred_check_branch
      %157 = sbr.rel (0) target = $region25
    $region24: #{tpu_custom_call.1} parent=1 // pred_region
      %159 = vsyncadd [#allocation4], 0
      %s160 = sshll.u32 [#allocation7], 4
      %s161 = int_to_ptr.vmem [resolvable:$true] %s160
      %s162 = sshll.u32 %s3, 4
      %s163 = int_to_ptr.hbm [resolvable:$true] %s162
      %168 = dma.vmem_to_hbm [thread:$0]  %s161, 512, %s163, [#allocation4], 128, 128, 8
    $region25: #{tpu_custom_call.1} parent=1 // pred_fallthru
      _
    // Predicated region
    $region26: #{tpu_custom_call.1} parent=1 // pred_check
      _
    $region27: #{tpu_custom_call.1} parent=1 // pred_check_branch
      %170 = sbr.rel (0) target = $region29
    $region28: #{tpu_custom_call.1} parent=1 // pred_region
      %172 = dma.done [#allocation4], 512
    $region29: #{tpu_custom_call.1} parent=1 // pred_fallthru
      _
    %173 = vsyncpa [#allocation3], 1
    %174 = vsyncpa [#allocation6], 1
    %175 = vsyncpa [#allocation4], 1

</llo_original>
